<compile_context>
chip_gen: v6e
topology: v6e:2x2x1
jax: 0.10.0
libtpu: 0.0.40
codegen_flags: <defaults>
</compile_context>

<pallas_src>
import functools

import jax
import jax.numpy as jnp
from jax.experimental import pallas as pl
from jax.experimental.pallas import tpu as pltpu


def _width_interleave(x, scale):
    """(R, W) -> (R, W*scale) with out[:, w*scale + m] = x[:, w]  (pure copy)."""
    if scale == 1:
        return x
    r, w = x.shape
    if w <= 128:
        # Bulletproof lowering for modest widths: per-column lane broadcast +
        # a single concatenate.  All register-level data movement, no reshapes.
        cols = [jnp.broadcast_to(x[:, i:i + 1], (r, scale)) for i in range(w)]
        return jnp.concatenate(cols, axis=1)
    # Wide rows: use the natural broadcast+reshape formulation (fewer ops).
    return jnp.repeat(x, scale, axis=1)


def _nn_upsample_kernel(x_ref, o_ref, *, scale):
    # x_ref: (TR, W) fused input rows.  o_ref: (TR, scale*scale*W) -- the exact
    # NCHW memory of the scale x scale replicated output pixels for those rows.
    x = x_ref[...]                                     # (TR, W)
    xw = _width_interleave(x, scale)                   # (TR, scale*W)
    if scale > 1:
        o_ref[...] = jnp.concatenate([xw] * scale, axis=1)   # height copies (lanes)
    else:
        o_ref[...] = xw


def _vmem_budget_bytes():
    """~3/4 of physical VMEM: ~48 MiB on v7x (64 MiB), ~96 MiB on v5e/v6e (128 MiB)."""
    default = 64 * 1024 * 1024
    try:
        cap = int(getattr(pltpu.get_tpu_info(), "vmem_capacity_bytes", default))
    except Exception:
        cap = default
    if cap <= 0:
        cap = default
    return (cap * 3) // 4


def _pick_row_tile(n_rows, bytes_per_row, max_block_bytes):
    """Row tile TR (divisor of n_rows, sublane-aligned) giving >=2 (pref >=4, even)
    grid steps whose double-buffered blocks fit the VMEM budget; then as large as
    possible for big contiguous DMAs."""
    best, best_key = n_rows, None
    for d in range(1, n_rows + 1):
        if n_rows % d:
            continue
        if (d % 8) and d != n_rows:          # keep blocks sublane-aligned ((8,128) rule)
            continue
        steps = n_rows // d
        key = (
            d * bytes_per_row <= max_block_bytes,  # per-step block fits VMEM budget
            steps >= 2,                            # enable software pipelining
            steps >= 4,                            # enough steps to hide writeback DMA
            steps % 2 == 0,                        # even split across v7x's 2 TensorCores
            d,                                     # then: biggest contiguous DMAs
        )
        if best_key is None or key > best_key:
            best, best_key = d, key
    return best


def nearest_neighbor_upsample(x, scale_factor=2):
    """NCHW nearest-neighbor upsample by an integer scale_factor (float32 output)."""
    B, C, H, W = x.shape
    s = int(scale_factor)
    OH, OW = H * s, W * s

    x = x.astype(jnp.float32)            # PyTorch module writes into a float32 buffer
    n_rows = B * C * H                   # fused (batch, channel, height) row axis
    in_row_bytes = W * 4
    out_row_bytes = s * s * W * 4        # one input row -> s*s*W contiguous output floats

    x2 = x.reshape(n_rows, W)            # free row-major reshape

    # Tile the row axis: >=2 (ideally >=4, even) grid steps, generation-aware VMEM.
    vmem_budget = _vmem_budget_bytes()
    max_block_bytes = min(vmem_budget // 3, 16 * 1024 * 1024)
    TR = _pick_row_tile(n_rows, in_row_bytes + out_row_bytes, max_block_bytes)
    grid = (n_rows // TR,)

    # Double-buffered input + output blocks; never clamp the ask below the need.
    vmem_need = 2 * TR * (in_row_bytes + out_row_bytes)
    vmem_limit = int(min(max(vmem_need + (4 << 20), 16 << 20), vmem_budget))
    vmem_limit = max(vmem_limit, vmem_need)

    # Honest, memory-bound cost estimate: no FLOPs, (1 + s^2) * input bytes moved.
    cost = pl.CostEstimate(
        flops=0,
        transcendentals=0,
        bytes_accessed=n_rows * (in_row_bytes + out_row_bytes),
    )

    kernel = functools.partial(_nn_upsample_kernel, scale=s)

    out_flat = pl.pallas_call(
        kernel,
        out_shape=jax.ShapeDtypeStruct((n_rows, s * s * W), jnp.float32),
        grid=grid,
        in_specs=[pl.BlockSpec((TR, W), lambda i: (i, 0))],
        out_specs=pl.BlockSpec((TR, s * s * W), lambda i: (i, 0)),
        compiler_params=pltpu.CompilerParams(
            dimension_semantics=("parallel",),
            vmem_limit_bytes=vmem_limit,
        ),
        cost_estimate=cost,
    )(x2)

    # (n_rows, s*s*W) is exactly the NCHW output memory layout; reshape is free.
    return out_flat.reshape(B, C, OH, OW)


if __name__ == "__main__":
    key = jax.random.PRNGKey(0)
    B, C, H, W = 2, 4, 16, 16
    scale = 2

    x = jax.random.normal(key, (B, C, H, W), dtype=jnp.float32)

    out = jax.block_until_ready(nearest_neighbor_upsample(x, scale_factor=scale))

    # Pure-JAX reference of the PyTorch loop semantics.
    ref = jnp.repeat(jnp.repeat(x, scale, axis=2), scale, axis=3).astype(jnp.float32)

    assert out.shape == (B, C, H * scale, W * scale), out.shape
    assert out.dtype == jnp.float32, out.dtype
    assert jnp.array_equal(out, ref), "mismatch vs reference"

    print("KERNEL_OK")
</pallas_src>

<mosaic_0001>
module attributes {stable_mosaic.version = 11 : i64} {
  func.func @_nn_upsample_kernel(%arg0: i32, %arg1: memref<32x16xf32, #tpu.memory_space<vmem>>, %arg2: memref<32x64xf32, #tpu.memory_space<vmem>>) attributes {dimension_semantics = [#tpu.dimension_semantics<parallel>], iteration_bounds = array<i64: 4>, scalar_prefetch = 0 : i64, scratch_operands = 0 : i64, tpu.core_type = #tpu.core_type<tc>, window_params = [{transform_indices = @transform_0, window_bounds = array<i64: 32, 16>}, {transform_indices = @transform_1, window_bounds = array<i64: 32, 64>}]} {
    %c0 = arith.constant 0 : index
    %c0_0 = arith.constant 0 : index
    %0 = vector.load %arg1[%c0, %c0_0] : memref<32x16xf32, #tpu.memory_space<vmem>>, vector<32x16xf32>
    %1 = vector.extract_strided_slice %0 {offsets = [0, 0], sizes = [32, 1], strides = [1, 1]} : vector<32x16xf32> to vector<32x1xf32>
    %2 = vector.shape_cast %1 : vector<32x1xf32> to vector<32x1xf32>
    %3 = vector.broadcast %2 : vector<32x1xf32> to vector<32x2xf32>
    %4 = vector.extract_strided_slice %0 {offsets = [0, 1], sizes = [32, 1], strides = [1, 1]} : vector<32x16xf32> to vector<32x1xf32>
    %5 = vector.shape_cast %4 : vector<32x1xf32> to vector<32x1xf32>
    %6 = vector.broadcast %5 : vector<32x1xf32> to vector<32x2xf32>
    %7 = vector.extract_strided_slice %0 {offsets = [0, 2], sizes = [32, 1], strides = [1, 1]} : vector<32x16xf32> to vector<32x1xf32>
    %8 = vector.shape_cast %7 : vector<32x1xf32> to vector<32x1xf32>
    %9 = vector.broadcast %8 : vector<32x1xf32> to vector<32x2xf32>
    %10 = vector.extract_strided_slice %0 {offsets = [0, 3], sizes = [32, 1], strides = [1, 1]} : vector<32x16xf32> to vector<32x1xf32>
    %11 = vector.shape_cast %10 : vector<32x1xf32> to vector<32x1xf32>
    %12 = vector.broadcast %11 : vector<32x1xf32> to vector<32x2xf32>
    %13 = vector.extract_strided_slice %0 {offsets = [0, 4], sizes = [32, 1], strides = [1, 1]} : vector<32x16xf32> to vector<32x1xf32>
    %14 = vector.shape_cast %13 : vector<32x1xf32> to vector<32x1xf32>
    %15 = vector.broadcast %14 : vector<32x1xf32> to vector<32x2xf32>
    %16 = vector.extract_strided_slice %0 {offsets = [0, 5], sizes = [32, 1], strides = [1, 1]} : vector<32x16xf32> to vector<32x1xf32>
    %17 = vector.shape_cast %16 : vector<32x1xf32> to vector<32x1xf32>
    %18 = vector.broadcast %17 : vector<32x1xf32> to vector<32x2xf32>
    %19 = vector.extract_strided_slice %0 {offsets = [0, 6], sizes = [32, 1], strides = [1, 1]} : vector<32x16xf32> to vector<32x1xf32>
    %20 = vector.shape_cast %19 : vector<32x1xf32> to vector<32x1xf32>
    %21 = vector.broadcast %20 : vector<32x1xf32> to vector<32x2xf32>
    %22 = vector.extract_strided_slice %0 {offsets = [0, 7], sizes = [32, 1], strides = [1, 1]} : vector<32x16xf32> to vector<32x1xf32>
    %23 = vector.shape_cast %22 : vector<32x1xf32> to vector<32x1xf32>
    %24 = vector.broadcast %23 : vector<32x1xf32> to vector<32x2xf32>
    %25 = vector.extract_strided_slice %0 {offsets = [0, 8], sizes = [32, 1], strides = [1, 1]} : vector<32x16xf32> to vector<32x1xf32>
    %26 = vector.shape_cast %25 : vector<32x1xf32> to vector<32x1xf32>
    %27 = vector.broadcast %26 : vector<32x1xf32> to vector<32x2xf32>
    %28 = vector.extract_strided_slice %0 {offsets = [0, 9], sizes = [32, 1], strides = [1, 1]} : vector<32x16xf32> to vector<32x1xf32>
    %29 = vector.shape_cast %28 : vector<32x1xf32> to vector<32x1xf32>
    %30 = vector.broadcast %29 : vector<32x1xf32> to vector<32x2xf32>
    %31 = vector.extract_strided_slice %0 {offsets = [0, 10], sizes = [32, 1], strides = [1, 1]} : vector<32x16xf32> to vector<32x1xf32>
    %32 = vector.shape_cast %31 : vector<32x1xf32> to vector<32x1xf32>
    %33 = vector.broadcast %32 : vector<32x1xf32> to vector<32x2xf32>
    %34 = vector.extract_strided_slice %0 {offsets = [0, 11], sizes = [32, 1], strides = [1, 1]} : vector<32x16xf32> to vector<32x1xf32>
    %35 = vector.shape_cast %34 : vector<32x1xf32> to vector<32x1xf32>
    %36 = vector.broadcast %35 : vector<32x1xf32> to vector<32x2xf32>
    %37 = vector.extract_strided_slice %0 {offsets = [0, 12], sizes = [32, 1], strides = [1, 1]} : vector<32x16xf32> to vector<32x1xf32>
    %38 = vector.shape_cast %37 : vector<32x1xf32> to vector<32x1xf32>
    %39 = vector.broadcast %38 : vector<32x1xf32> to vector<32x2xf32>
    %40 = vector.extract_strided_slice %0 {offsets = [0, 13], sizes = [32, 1], strides = [1, 1]} : vector<32x16xf32> to vector<32x1xf32>
    %41 = vector.shape_cast %40 : vector<32x1xf32> to vector<32x1xf32>
    %42 = vector.broadcast %41 : vector<32x1xf32> to vector<32x2xf32>
    %43 = vector.extract_strided_slice %0 {offsets = [0, 14], sizes = [32, 1], strides = [1, 1]} : vector<32x16xf32> to vector<32x1xf32>
    %44 = vector.shape_cast %43 : vector<32x1xf32> to vector<32x1xf32>
    %45 = vector.broadcast %44 : vector<32x1xf32> to vector<32x2xf32>
    %46 = vector.extract_strided_slice %0 {offsets = [0, 15], sizes = [32, 1], strides = [1, 1]} : vector<32x16xf32> to vector<32x1xf32>
    %47 = vector.shape_cast %46 : vector<32x1xf32> to vector<32x1xf32>
    %48 = vector.broadcast %47 : vector<32x1xf32> to vector<32x2xf32>
    %49 = tpu.concatenate %3, %6, %9, %12, %15, %18, %21, %24, %27, %30, %33, %36, %39, %42, %45, %48 in 1 : vector<32x2xf32>, vector<32x2xf32>, vector<32x2xf32>, vector<32x2xf32>, vector<32x2xf32>, vector<32x2xf32>, vector<32x2xf32>, vector<32x2xf32>, vector<32x2xf32>, vector<32x2xf32>, vector<32x2xf32>, vector<32x2xf32>, vector<32x2xf32>, vector<32x2xf32>, vector<32x2xf32>, vector<32x2xf32> -> vector<32x32xf32>
    %50 = tpu.concatenate %49, %49 in 1 : vector<32x32xf32>, vector<32x32xf32> -> vector<32x64xf32>
    %c0_1 = arith.constant 0 : index
    %c0_2 = arith.constant 0 : index
    %51 = vector.load %arg2[%c0_1, %c0_2] : memref<32x64xf32, #tpu.memory_space<vmem>>, vector<32x64xf32>
    tpu.vector_store %arg2[%c0_1, %c0_2], %50 {strides = array<i32>} : memref<32x64xf32, #tpu.memory_space<vmem>>, vector<32x64xf32>,
    return
  }
  func.func @transform_0(%arg0: i32) -> (i32, i32) {
    %c0_i32 = arith.constant 0 : i32
    %c0_i32_0 = arith.constant 0 : i32
    return %arg0, %c0_i32 : i32, i32
  }
  func.func @transform_1(%arg0: i32) -> (i32, i32) {
    %c0_i32 = arith.constant 0 : i32
    %c0_i32_0 = arith.constant 0 : i32
    return %arg0, %c0_i32 : i32, i32
  }
}

</mosaic_0001>

<llo_original>
// kernel: tpu_custom_call.1
$region0: #{tpu_custom_call.1}
  #allocation0 [shape = 'u32[]', space=smem, size = 0x4, offset = 0x4, fixed_abs, tag = 'smem constant byte address 0x4 - core index']
  #allocation1 [shape = 'u32[144,128]{1,0:T(1,128)}', space=vmem, size = 0x12000, scoped, tag = 'internal scratch']
  %s0 = inlined_call_operand.vmem [shape: f32[128,16], index: 0, kind: input, shape index: {}]
  %s1 = inlined_call_operand.vmem [shape: f32[128,64], index: 1, kind: output, shape index: {}]
  %s2 = sld [smem:[#allocation0]]
  $region37: #{tpu_custom_call.1} parent=0
    _
  %s4 = ssub.s32 1, %s2
  %s5 = scalar_select 0, %s4, %s2
  loop: start=0, step=1, limit=6
  $region2: #{tpu_custom_call.1} parent=0 // loop_pre_header
    _
  $region3: #{tpu_custom_call.1} parent=0 // loop_header
    %s7 = sphi 0, %s11
    %p8 = scmp.ge.s32.totalorder %s7, 6
    %s17 = sphi 0, %s19
    %s20 = sphi 0, %s17
    %s21 = sphi 0, %s20
    %s37 = sphi 0, %s21
    %s43 = sphi 0, %s45
    %s46 = sphi 0, %s43
    %s47 = sphi 0, %s46
    %s63 = sphi 0, %s47
  $region4: #{tpu_custom_call.1} parent=0 // loop_header_branch
    %10 = sbr.rel (%p8) target = $region8
  $region5: #{tpu_custom_call.1} parent=0 // loop_body
    %s12 = ssub.s32 %s7, 1
    %s13 = ssub.s32 %s7, 2
    %s14 = sadd.s32 %s7, 1
    %s15 = ssub.s32 %s7, %s14
    %p16 = scmp.eq.s32.totalorder %s15, 0
    %s18 = sadd.s32 %s17, 1
    %s19 = scalar_select %p16, %s17, %s18
    %p22 = pneg %p16
    %p23 = scmp.eq.s32.totalorder %s7, 3
    %p24 = por %p22, %p23
    %p25 = scmp.ne.s32.totalorder %s17, %s20
    %p26 = scmp.eq.s32.totalorder %s7, 0
    %p27 = por %p25, %p26
    %p28 = scmp.ne.s32.totalorder %s17, %s20
    %p29 = scmp.eq.s32.totalorder %s12, 3
    %p30 = por %p28, %p29
    %p31 = scmp.ne.s32.totalorder %s20, %s21
    %p32 = scmp.eq.s32.totalorder %s12, 0
    %p33 = por %p31, %p32
    %p34 = scmp.ne.s32.totalorder %s20, %s21
    %p35 = scmp.eq.s32.totalorder %s13, 3
    %p36 = por %p34, %p35
    %p38 = scmp.ne.s32.totalorder %s21, %s37
    %p39 = scmp.eq.s32.totalorder %s13, 0
    %p40 = por %p38, %p39
    %s41 = ssub.s32 %s7, %s14
    %p42 = scmp.eq.s32.totalorder %s41, 0
    %s44 = sadd.s32 %s43, 1
    %s45 = scalar_select %p42, %s43, %s44
    %p48 = pneg %p42
    %p49 = scmp.eq.s32.totalorder %s7, 3
    %p50 = por %p48, %p49
    %p51 = scmp.ne.s32.totalorder %s43, %s46
    %p52 = scmp.eq.s32.totalorder %s7, 0
    %p53 = por %p51, %p52
    %p54 = scmp.ne.s32.totalorder %s43, %s46
    %p55 = scmp.eq.s32.totalorder %s12, 3
    %p56 = por %p54, %p55
    %p57 = scmp.ne.s32.totalorder %s46, %s47
    %p58 = scmp.eq.s32.totalorder %s12, 0
    %p59 = por %p57, %p58
    %p60 = scmp.ne.s32.totalorder %s46, %s47
    %p61 = scmp.eq.s32.totalorder %s13, 3
    %p62 = por %p60, %p61
    %p64 = scmp.ne.s32.totalorder %s47, %s63
    %p65 = scmp.eq.s32.totalorder %s13, 0
    %p66 = por %p64, %p65
    %p67 = scmp.le.s32.totalorder 1, %s7
    %p68 = scmp.lt.s32.totalorder %s7, 5
    %p69 = pnand %p67, %p68
    %p70 = pneg %p69
    // Predicated region
    $region9: #{tpu_custom_call.1} parent=5 // pred_check
      _
    $region10: #{tpu_custom_call.1} parent=5 // pred_check_branch
      %72 = sbr.rel (%p69) target = $region12
    $region11: #{tpu_custom_call.1} parent=5 // pred_region
      %s73 = ssub.s32 %s7, 1
    $region12: #{tpu_custom_call.1} parent=5 // pred_fallthru
      _
    %p74 = scmp.lt.s32.totalorder %s7, 4
    // Predicated region
    $region13: #{tpu_custom_call.1} parent=5 // pred_check
      %p75 = pneg %p74
    $region14: #{tpu_custom_call.1} parent=5 // pred_check_branch
      %77 = sbr.rel (%p75) target = $region16
    $region15: #{tpu_custom_call.1} parent=5 // pred_region
      // Predicated region
      $region17: #{tpu_custom_call.1} parent=15 // pred_check
        %p78 = pneg %p27
      $region18: #{tpu_custom_call.1} parent=15 // pred_check_branch
        %80 = sbr.rel (%p78) target = $region20
      $region19: #{tpu_custom_call.1} parent=15 // pred_region
        %s81 = smul.u32 4, %s7
        %p82 = scmp.lt.s32.totalorder %s81, 15
        %s83 = scalar_select %p82, %s81, 15
        %s84 = smul.addr %s83, 8
        %s85 = scalar_lea.vmem %s0, %s84
        %s86 = smul.u32 4, %s7
      $region20: #{tpu_custom_call.1} parent=15 // pred_fallthru
        _
    $region16: #{tpu_custom_call.1} parent=5 // pred_fallthru
      _
    %p87 = scmp.le.s32.totalorder 1, %s7
    %p88 = scmp.lt.s32.totalorder %s7, 5
    %p89 = pnand %p87, %p88
    %p90 = pneg %p89
    // Predicated region
    $region21: #{tpu_custom_call.1} parent=5 // pred_check
      _
    $region22: #{tpu_custom_call.1} parent=5 // pred_check_branch
      %92 = sbr.rel (%p89) target = $region24
    $region23: #{tpu_custom_call.1} parent=5 // pred_region
      %s93 = ssub.s32 %s7, 1
      %s94 = smul.u32 4, %s12
      %p95 = scmp.lt.s32.totalorder %s94, 15
      %s96 = scalar_select %p95, %s94, 15
      %s97 = smul.addr %s96, 8
      %s98 = scalar_lea.vmem %s0, %s97
      %p99 = pneg %p33
      %p100 = pneg %p30
      %p101 = pneg %p59
      %p102 = pneg %p56
      %s103 = smul.u32 4, %s12
      %p104 = scmp.lt.s32.totalorder %s103, 15
      %s105 = scalar_select %p104, %s103, 15
      %s106 = smul.addr %s105, 8
      %s107 = scalar_lea.vmem %s1, %s106
      %s108 = smul.u32 4, %s12
      %p109 = scmp.lt.s32.totalorder %s108, 15
      %s110 = scalar_select %p109, %s108, 15
      %s111 = smul.addr %s110, 8
      %s112 = scalar_lea.vmem %s0, %s111
      %s113 = smul.u32 4, %s12
      %s114 = smul.u32 4, %s12
      %p115 = scmp.lt.s32.totalorder %s114, 15
      %s116 = scalar_select %p115, %s114, 15
      %s117 = smul.addr %s116, 8
      %s118 = scalar_lea.vmem %s1, %s117
      %s119 = smul.u32 4, %s12
      %v120 = vld [vmem:[%s112] sm:$0xff]
      %v121 = vld [vmem:[%s112 + $0x8] sm:$0xff]
      %v122 = vld [vmem:[%s112 + $0x10] sm:$0xff]
      %v123 = vld [vmem:[%s112 + $0x18] sm:$0xff]
      %125 = vset.pattern.permute.xlu0 0
      %126 = vperm.xlu0 %125, %v120
      %v127 = vpop.permute.xlu0 %126
      %130 = vset.pattern.permute.xlu0 0
      %131 = vperm.xlu0 %130, %v121
      %v132 = vpop.permute.xlu0 %131
      %135 = vset.pattern.permute.xlu0 0
      %136 = vperm.xlu0 %135, %v122
      %v137 = vpop.permute.xlu0 %136
      %140 = vset.pattern.permute.xlu0 0
      %141 = vperm.xlu0 %140, %v123
      %v142 = vpop.permute.xlu0 %141
      %144 = vset.pattern.permute.xlu0 1
      %145 = vperm.xlu0 %144, %v120
      %v146 = vpop.permute.xlu0 %145
      %148 = vset.pattern.permute.xlu0 1
      %149 = vperm.xlu0 %148, %v121
      %v150 = vpop.permute.xlu0 %149
      %152 = vset.pattern.permute.xlu0 1
      %153 = vperm.xlu0 %152, %v122
      %v154 = vpop.permute.xlu0 %153
      %156 = vset.pattern.permute.xlu0 1
      %157 = vperm.xlu0 %156, %v123
      %v158 = vpop.permute.xlu0 %157
      %160 = vset.pattern.permute.xlu0 2
      %161 = vperm.xlu0 %160, %v120
      %v162 = vpop.permute.xlu0 %161
      %164 = vset.pattern.permute.xlu0 2
      %165 = vperm.xlu0 %164, %v121
      %v166 = vpop.permute.xlu0 %165
      %168 = vset.pattern.permute.xlu0 2
      %169 = vperm.xlu0 %168, %v122
      %v170 = vpop.permute.xlu0 %169
      %172 = vset.pattern.permute.xlu0 2
      %173 = vperm.xlu0 %172, %v123
      %v174 = vpop.permute.xlu0 %173
      %176 = vset.pattern.permute.xlu0 3
      %177 = vperm.xlu0 %176, %v120
      %v178 = vpop.permute.xlu0 %177
      %180 = vset.pattern.permute.xlu0 3
      %181 = vperm.xlu0 %180, %v121
      %v182 = vpop.permute.xlu0 %181
      %184 = vset.pattern.permute.xlu0 3
      %185 = vperm.xlu0 %184, %v122
      %v186 = vpop.permute.xlu0 %185
      %188 = vset.pattern.permute.xlu0 3
      %189 = vperm.xlu0 %188, %v123
      %v190 = vpop.permute.xlu0 %189
      %192 = vset.pattern.permute.xlu0 4
      %193 = vperm.xlu0 %192, %v120
      %v194 = vpop.permute.xlu0 %193
      %196 = vset.pattern.permute.xlu0 4
      %197 = vperm.xlu0 %196, %v121
      %v198 = vpop.permute.xlu0 %197
      %200 = vset.pattern.permute.xlu0 4
      %201 = vperm.xlu0 %200, %v122
      %v202 = vpop.permute.xlu0 %201
      %204 = vset.pattern.permute.xlu0 4
      %205 = vperm.xlu0 %204, %v123
      %v206 = vpop.permute.xlu0 %205
      %208 = vset.pattern.permute.xlu0 5
      %209 = vperm.xlu0 %208, %v120
      %v210 = vpop.permute.xlu0 %209
      %212 = vset.pattern.permute.xlu0 5
      %213 = vperm.xlu0 %212, %v121
      %v214 = vpop.permute.xlu0 %213
      %216 = vset.pattern.permute.xlu0 5
      %217 = vperm.xlu0 %216, %v122
      %v218 = vpop.permute.xlu0 %217
      %220 = vset.pattern.permute.xlu0 5
      %221 = vperm.xlu0 %220, %v123
      %v222 = vpop.permute.xlu0 %221
      %224 = vset.pattern.permute.xlu0 6
      %225 = vperm.xlu0 %224, %v120
      %v226 = vpop.permute.xlu0 %225
      %228 = vset.pattern.permute.xlu0 6
      %229 = vperm.xlu0 %228, %v121
      %v230 = vpop.permute.xlu0 %229
      %232 = vset.pattern.permute.xlu0 6
      %233 = vperm.xlu0 %232, %v122
      %v234 = vpop.permute.xlu0 %233
      %236 = vset.pattern.permute.xlu0 6
      %237 = vperm.xlu0 %236, %v123
      %v238 = vpop.permute.xlu0 %237
      %240 = vset.pattern.permute.xlu0 7
      %241 = vperm.xlu0 %240, %v120
      %v242 = vpop.permute.xlu0 %241
      %244 = vset.pattern.permute.xlu0 7
      %245 = vperm.xlu0 %244, %v121
      %v246 = vpop.permute.xlu0 %245
      %248 = vset.pattern.permute.xlu0 7
      %249 = vperm.xlu0 %248, %v122
      %v250 = vpop.permute.xlu0 %249
      %252 = vset.pattern.permute.xlu0 7
      %253 = vperm.xlu0 %252, %v123
      %v254 = vpop.permute.xlu0 %253
      %256 = vset.pattern.permute.xlu0 8
      %257 = vperm.xlu0 %256, %v120
      %v258 = vpop.permute.xlu0 %257
      %260 = vset.pattern.permute.xlu0 8
      %261 = vperm.xlu0 %260, %v121
      %v262 = vpop.permute.xlu0 %261
      %264 = vset.pattern.permute.xlu0 8
      %265 = vperm.xlu0 %264, %v122
      %v266 = vpop.permute.xlu0 %265
      %268 = vset.pattern.permute.xlu0 8
      %269 = vperm.xlu0 %268, %v123
      %v270 = vpop.permute.xlu0 %269
      %272 = vset.pattern.permute.xlu0 9
      %273 = vperm.xlu0 %272, %v120
      %v274 = vpop.permute.xlu0 %273
      %276 = vset.pattern.permute.xlu0 9
      %277 = vperm.xlu0 %276, %v121
      %v278 = vpop.permute.xlu0 %277
      %280 = vset.pattern.permute.xlu0 9
      %281 = vperm.xlu0 %280, %v122
      %v282 = vpop.permute.xlu0 %281
      %284 = vset.pattern.permute.xlu0 9
      %285 = vperm.xlu0 %284, %v123
      %v286 = vpop.permute.xlu0 %285
      %288 = vset.pattern.permute.xlu0 10
      %289 = vperm.xlu0 %288, %v120
      %v290 = vpop.permute.xlu0 %289
      %292 = vset.pattern.permute.xlu0 10
      %293 = vperm.xlu0 %292, %v121
      %v294 = vpop.permute.xlu0 %293
      %296 = vset.pattern.permute.xlu0 10
      %297 = vperm.xlu0 %296, %v122
      %v298 = vpop.permute.xlu0 %297
      %300 = vset.pattern.permute.xlu0 10
      %301 = vperm.xlu0 %300, %v123
      %v302 = vpop.permute.xlu0 %301
      %304 = vset.pattern.permute.xlu0 11
      %305 = vperm.xlu0 %304, %v120
      %v306 = vpop.permute.xlu0 %305
      %308 = vset.pattern.permute.xlu0 11
      %309 = vperm.xlu0 %308, %v121
      %v310 = vpop.permute.xlu0 %309
      %312 = vset.pattern.permute.xlu0 11
      %313 = vperm.xlu0 %312, %v122
      %v314 = vpop.permute.xlu0 %313
      %316 = vset.pattern.permute.xlu0 11
      %317 = vperm.xlu0 %316, %v123
      %v318 = vpop.permute.xlu0 %317
      %320 = vset.pattern.permute.xlu0 12
      %321 = vperm.xlu0 %320, %v120
      %v322 = vpop.permute.xlu0 %321
      %324 = vset.pattern.permute.xlu0 12
      %325 = vperm.xlu0 %324, %v121
      %v326 = vpop.permute.xlu0 %325
      %328 = vset.pattern.permute.xlu0 12
      %329 = vperm.xlu0 %328, %v122
      %v330 = vpop.permute.xlu0 %329
      %332 = vset.pattern.permute.xlu0 12
      %333 = vperm.xlu0 %332, %v123
      %v334 = vpop.permute.xlu0 %333
      %336 = vset.pattern.permute.xlu0 13
      %337 = vperm.xlu0 %336, %v120
      %v338 = vpop.permute.xlu0 %337
      %340 = vset.pattern.permute.xlu0 13
      %341 = vperm.xlu0 %340, %v121
      %v342 = vpop.permute.xlu0 %341
      %344 = vset.pattern.permute.xlu0 13
      %345 = vperm.xlu0 %344, %v122
      %v346 = vpop.permute.xlu0 %345
      %348 = vset.pattern.permute.xlu0 13
      %349 = vperm.xlu0 %348, %v123
      %v350 = vpop.permute.xlu0 %349
      %352 = vset.pattern.permute.xlu0 14
      %353 = vperm.xlu0 %352, %v120
      %v354 = vpop.permute.xlu0 %353
      %356 = vset.pattern.permute.xlu0 14
      %357 = vperm.xlu0 %356, %v121
      %v358 = vpop.permute.xlu0 %357
      %360 = vset.pattern.permute.xlu0 14
      %361 = vperm.xlu0 %360, %v122
      %v362 = vpop.permute.xlu0 %361
      %364 = vset.pattern.permute.xlu0 14
      %365 = vperm.xlu0 %364, %v123
      %v366 = vpop.permute.xlu0 %365
      %368 = vset.pattern.permute.xlu0 15
      %369 = vperm.xlu0 %368, %v120
      %v370 = vpop.permute.xlu0 %369
      %372 = vset.pattern.permute.xlu0 15
      %373 = vperm.xlu0 %372, %v121
      %v374 = vpop.permute.xlu0 %373
      %376 = vset.pattern.permute.xlu0 15
      %377 = vperm.xlu0 %376, %v122
      %v378 = vpop.permute.xlu0 %377
      %380 = vset.pattern.permute.xlu0 15
      %381 = vperm.xlu0 %380, %v123
      %v382 = vpop.permute.xlu0 %381
      %vm384 = vcmask 15360
      %v385 = vsel %vm384, %v127, %v146
      %v386 = vsel %vm384, %v132, %v150
      %v387 = vsel %vm384, %v137, %v154
      %v388 = vsel %vm384, %v142, %v158
      %vm389 = vcmask 31744
      %v390 = vsel %vm389, %v385, %v162
      %v391 = vsel %vm389, %v386, %v166
      %v392 = vsel %vm389, %v387, %v170
      %v393 = vsel %vm389, %v388, %v174
      %vm394 = vcmask 48128
      %v395 = vsel %vm394, %v390, %v178
      %v396 = vsel %vm394, %v391, %v182
      %v397 = vsel %vm394, %v392, %v186
      %v398 = vsel %vm394, %v393, %v190
      %vm399 = vcmask 64512
      %v400 = vsel %vm399, %v395, %v194
      %v401 = vsel %vm399, %v396, %v198
      %v402 = vsel %vm399, %v397, %v202
      %v403 = vsel %vm399, %v398, %v206
      %vm404 = vcmask 80896
      %v405 = vsel %vm404, %v400, %v210
      %v406 = vsel %vm404, %v401, %v214
      %v407 = vsel %vm404, %v402, %v218
      %v408 = vsel %vm404, %v403, %v222
      %vm409 = vcmask 97280
      %v410 = vsel %vm409, %v405, %v226
      %v411 = vsel %vm409, %v406, %v230
      %v412 = vsel %vm409, %v407, %v234
      %v413 = vsel %vm409, %v408, %v238
      %vm414 = vcmask 113664
      %v415 = vsel %vm414, %v410, %v242
      %v416 = vsel %vm414, %v411, %v246
      %v417 = vsel %vm414, %v412, %v250
      %v418 = vsel %vm414, %v413, %v254
      %vm419 = vcmask 130048
      %v420 = vsel %vm419, %v415, %v258
      %v421 = vsel %vm419, %v416, %v262
      %v422 = vsel %vm419, %v417, %v266
      %v423 = vsel %vm419, %v418, %v270
      %vm424 = vcmask 146432
      %v425 = vsel %vm424, %v420, %v274
      %v426 = vsel %vm424, %v421, %v278
      %v427 = vsel %vm424, %v422, %v282
      %v428 = vsel %vm424, %v423, %v286
      %vm429 = vcmask 162816
      %v430 = vsel %vm429, %v425, %v290
      %v431 = vsel %vm429, %v426, %v294
      %v432 = vsel %vm429, %v427, %v298
      %v433 = vsel %vm429, %v428, %v302
      %vm434 = vcmask 179200
      %v435 = vsel %vm434, %v430, %v306
      %v436 = vsel %vm434, %v431, %v310
      %v437 = vsel %vm434, %v432, %v314
      %v438 = vsel %vm434, %v433, %v318
      %vm439 = vcmask 195584
      %v440 = vsel %vm439, %v435, %v322
      %v441 = vsel %vm439, %v436, %v326
      %v442 = vsel %vm439, %v437, %v330
      %v443 = vsel %vm439, %v438, %v334
      %vm444 = vcmask 211968
      %v445 = vsel %vm444, %v440, %v338
      %v446 = vsel %vm444, %v441, %v342
      %v447 = vsel %vm444, %v442, %v346
      %v448 = vsel %vm444, %v443, %v350
      %vm449 = vcmask 228352
      %v450 = vsel %vm449, %v445, %v354
      %v451 = vsel %vm449, %v446, %v358
      %v452 = vsel %vm449, %v447, %v362
      %v453 = vsel %vm449, %v448, %v366
      %vm454 = vcmask 244736
      %v455 = vsel %vm454, %v450, %v370
      %v456 = vsel %vm454, %v451, %v374
      %v457 = vsel %vm454, %v452, %v378
      %v458 = vsel %vm454, %v453, %v382
      %463 = vrot.lane.b32.xlu0 %v455, 32
      %v464 = vpop.permute.xlu0 %463
      %465 = vrot.lane.b32.xlu0 %v456, 32
      %v466 = vpop.permute.xlu0 %465
      %467 = vrot.lane.b32.xlu0 %v457, 32
      %v468 = vpop.permute.xlu0 %467
      %469 = vrot.lane.b32.xlu0 %v458, 32
      %v470 = vpop.permute.xlu0 %469
      %vm475 = vcmask 261120
      %v476 = vsel %vm475, %v455, %v464
      %v477 = vsel %vm475, %v456, %v466
      %v478 = vsel %vm475, %v457, %v468
      %v479 = vsel %vm475, %v458, %v470
      %vm480 = vcmask 523264
      %481 = vst.msk [vmem:[%s118] sm:$0xff] %vm480, %v476
      %482 = vst.msk [vmem:[%s118 + $0x8] sm:$0xff] %vm480, %v477
      %483 = vst.msk [vmem:[%s118 + $0x10] sm:$0xff] %vm480, %v478
      %484 = vst.msk [vmem:[%s118 + $0x18] sm:$0xff] %vm480, %v479
      %s485 = smul.u32 4, %s12
      %p486 = scmp.lt.s32.totalorder %s485, 15
      %s487 = scalar_select %p486, %s485, 15
      %s488 = smul.addr %s487, 8
      %s489 = scalar_lea.vmem %s1, %s488
      // Predicated region
      $region25: #{tpu_custom_call.1} parent=23 // pred_check
        %p490 = pneg %p56
      $region26: #{tpu_custom_call.1} parent=23 // pred_check_branch
        %492 = sbr.rel (%p490) target = $region28
      $region27: #{tpu_custom_call.1} parent=23 // pred_region
        %s493 = smul.u32 4, %s12
      $region28: #{tpu_custom_call.1} parent=23 // pred_fallthru
        _
    $region24: #{tpu_custom_call.1} parent=5 // pred_fallthru
      _
    %p494 = scmp.le.s32.totalorder 2, %s7
    // Predicated region
    $region29: #{tpu_custom_call.1} parent=5 // pred_check
      %p495 = pneg %p494
    $region30: #{tpu_custom_call.1} parent=5 // pred_check_branch
      %497 = sbr.rel (%p495) target = $region32
    $region31: #{tpu_custom_call.1} parent=5 // pred_region
      %s498 = ssub.s32 %s7, 2
      // Predicated region
      $region33: #{tpu_custom_call.1} parent=31 // pred_check
        %p499 = pneg %p62
      $region34: #{tpu_custom_call.1} parent=31 // pred_check_branch
        %501 = sbr.rel (%p499) target = $region36
      $region35: #{tpu_custom_call.1} parent=31 // pred_region
        %s502 = smul.u32 4, %s13
        %p503 = scmp.lt.s32.totalorder %s502, 15
        %s504 = scalar_select %p503, %s502, 15
        %s505 = smul.addr %s504, 8
        %s506 = scalar_lea.vmem %s1, %s505
      $region36: #{tpu_custom_call.1} parent=31 // pred_fallthru
        _
    $region32: #{tpu_custom_call.1} parent=5 // pred_fallthru
      _
  $region6: #{tpu_custom_call.1} parent=0 // loop_footer
    %s11 = sadd.s32 1, %s7
  $region7: #{tpu_custom_call.1} parent=0 // loop_footer_branch
    %6 = sbr.rel target = $region3
  $region8: #{tpu_custom_call.1} parent=0 // loop_exit
    _

</llo_original>
